<compile_context>
chip_gen: v7x
topology: tpu7x:2x2x1
jax: 0.10.0
libtpu: 0.0.40
codegen_flags: <defaults>
</compile_context>

<pallas_src>
import jax
import jax.numpy as jnp
from jax.experimental import pallas as pl
from jax.experimental.pallas import tpu as pltpu


def _linreg_kernel(w_ref, b_ref, x_ref, o_ref):
    # w_ref: (2,) f32 SMEM   b_ref: (1,) f32 SMEM
    # x_ref: (16, BLK) f32 VMEM  -- sublanes 0..7 = feature-0 slab,
    #                               sublanes 8..15 = feature-1 slab
    # o_ref: (8, BLK)  f32 VMEM  -- sublane- and lane-dense output slab
    w0 = w_ref[0]
    w1 = w_ref[1]
    b = b_ref[0]
    # Pure VPU: two scalar-broadcast multiplies + adds; slices at sublane
    # offsets 0 and 8 are vreg-tile aligned (no relayout copies).
    o_ref[...] = x_ref[0:8, :] * w0 + x_ref[8:16, :] * w1 + b


def _pick_block_cols(cols: int, target: int = 64 * 1024) -> int:
    """Columns of the 8-row repacked slab per grid step.

    target = 64K cols == 512K outputs/step (~12 MiB double-buffered VMEM):
    amortizes the ~0.35 us per-step overhead while fitting every generation's
    scoped-VMEM budget.  For larger problems aim for >=4 steps so the
    "parallel" axis shards across v7x's 2 TensorCores.
    """
    if cols <= target:
        return cols                       # single full-extent block (always legal)
    blk = min(target, -(-cols // 4))
    return max(128, (blk // 128) * 128)   # lane-dense multiple of 128


def linear_regression_feature_major(xt, w, b, *, block=None):
    """xt: (2, N) f32 feature-major, w: 2 elems, b: 1 elem -> (N, 1) f32.

    Preferred entry point: no transpose / no extra HBM pre-pass (the repack to
    (16, N/8) is a free row-major reshape).
    """
    assert xt.shape[0] == 2
    n = xt.shape[1]
    n8 = -(-n // 8) * 8
    if n8 != n:                           # tail-pad to a multiple of 8 rows only
        xt = jnp.pad(xt, ((0, 0), (0, n8 - n)))
    cols = n8 // 8
    xr = xt.reshape(16, cols)             # free reshape -> full 16-sublane slab

    blk = _pick_block_cols(cols) if block is None else block
    # (blk must be a multiple of 128 or equal to cols.)
    grid = (-(-cols // blk),)             # ragged last tile handled by Pallas

    out = pl.pallas_call(
        _linreg_kernel,
        out_shape=jax.ShapeDtypeStruct((8, cols), jnp.float32),
        grid=grid,
        in_specs=[
            pl.BlockSpec(memory_space=pltpu.MemorySpace.SMEM),   # w (2,) scalars
            pl.BlockSpec(memory_space=pltpu.MemorySpace.SMEM),   # b (1,) scalar
            pl.BlockSpec((16, blk), lambda i: (0, i)),           # repacked x slab
        ],
        out_specs=pl.BlockSpec((8, blk), lambda i: (0, i)),      # dense y slab
        compiler_params=pltpu.CompilerParams(
            dimension_semantics=("parallel",),                   # megacore-shardable
            vmem_limit_bytes=48 * 1024 * 1024,                   # v5e default is 16 MiB
        ),
    )(w.reshape(2).astype(jnp.float32), b.reshape(1).astype(jnp.float32), xr)

    y = out.reshape(n8, 1)                # free row-major reshape back to batch order
    return y if n8 == n else y[:n]        # slice only when N % 8 != 0


def linear_regression(x, w, b, *, block=None):
    """x: (N, 2) f32, w: (1, 2), b: (1, 1) -> (N, 1) f32  (== x @ w.T + b).

    Matching the torch module's batch-major input costs one fused
    transpose(+pad) pass; callers that can provide feature-major (2, N) data
    should call linear_regression_feature_major directly to skip it.
    """
    return linear_regression_feature_major(x.T, w, b, block=block)


if __name__ == "__main__":
    key = jax.random.PRNGKey(0)
    k_w, k_x, k_x2 = jax.random.split(key, 3)

    # Module parameters: self.w = randn_like([[2., -3.]]) -> (1, 2); self.b = zeros (1, 1).
    w = jax.random.normal(k_w, (1, 2), dtype=jnp.float32)
    b = jnp.zeros((1, 1), dtype=jnp.float32)

    linreg = jax.jit(linear_regression, static_argnames=("block",))

    # Small batch matching the module forward: (N, 2) -> (N, 1).
    x = jax.random.normal(k_x, (8, 2), dtype=jnp.float32)
    y = jax.block_until_ready(linreg(x, w, b))
    y_ref = x @ w.T + b
    assert y.shape == (8, 1)
    assert jnp.allclose(y, y_ref, atol=1e-5, rtol=1e-5)

    # Ragged batch + multi-step grid (3 lane tiles of 128, last one ragged).
    x2 = jax.random.normal(k_x2, (2500, 2), dtype=jnp.float32)
    y2 = jax.block_until_ready(linreg(x2, w, b, block=128))
    y2_ref = x2 @ w.T + b
    assert y2.shape == (2500, 1)
    assert jnp.allclose(y2, y2_ref, atol=1e-5, rtol=1e-5)

    print("KERNEL_OK")
</pallas_src>

<mosaic_0001>
module attributes {stable_mosaic.version = 11 : i64} {
  func.func @_linreg_kernel(%arg0: i32, %arg1: memref<2xf32, #tpu.memory_space<smem>>, %arg2: memref<1xf32, #tpu.memory_space<smem>>, %arg3: memref<16x1xf32, #tpu.memory_space<vmem>>, %arg4: memref<8x1xf32, #tpu.memory_space<vmem>>) attributes {dimension_semantics = [#tpu.dimension_semantics<parallel>], iteration_bounds = array<i64: 1>, scalar_prefetch = 0 : i64, scratch_operands = 0 : i64, tpu.core_type = #tpu.core_type<tc>, window_params = [{transform_indices = @transform_0, window_bounds = array<i64: 2>}, {transform_indices = @transform_1, window_bounds = array<i64: 1>}, {transform_indices = @transform_2, window_bounds = array<i64: 16, 1>}, {transform_indices = @transform_3, window_bounds = array<i64: 8, 1>}]} {
    %c0 = arith.constant 0 : index
    %0 = memref.load %arg1[%c0] : memref<2xf32, #tpu.memory_space<smem>>
    %c1 = arith.constant 1 : index
    %1 = memref.load %arg1[%c1] : memref<2xf32, #tpu.memory_space<smem>>
    %c0_0 = arith.constant 0 : index
    %2 = memref.load %arg2[%c0_0] : memref<1xf32, #tpu.memory_space<smem>>
    %c0_1 = arith.constant 0 : index
    %c0_2 = arith.constant 0 : index
    %3 = vector.load %arg3[%c0_1, %c0_2] : memref<16x1xf32, #tpu.memory_space<vmem>>, vector<8x1xf32>
    %4 = vector.broadcast %0 : f32 to vector<8x1xf32>
    %5 = arith.mulf %3, %4 : vector<8x1xf32>
    %c8 = arith.constant 8 : index
    %c0_3 = arith.constant 0 : index
    %6 = vector.load %arg3[%c8, %c0_3] : memref<16x1xf32, #tpu.memory_space<vmem>>, vector<8x1xf32>
    %7 = vector.broadcast %1 : f32 to vector<8x1xf32>
    %8 = arith.mulf %6, %7 : vector<8x1xf32>
    %9 = arith.addf %5, %8 : vector<8x1xf32>
    %10 = vector.broadcast %2 : f32 to vector<8x1xf32>
    %11 = arith.addf %9, %10 : vector<8x1xf32>
    %c0_4 = arith.constant 0 : index
    %c0_5 = arith.constant 0 : index
    %12 = vector.load %arg4[%c0_4, %c0_5] : memref<8x1xf32, #tpu.memory_space<vmem>>, vector<8x1xf32>
    tpu.vector_store %arg4[%c0_4, %c0_5], %11 {strides = array<i32>} : memref<8x1xf32, #tpu.memory_space<vmem>>, vector<8x1xf32>,
    return
  }
  func.func @transform_0(%arg0: i32) -> i32 {
    %c0_i32 = arith.constant 0 : i32
    %c0_i32_0 = arith.constant 0 : i32
    return %c0_i32 : i32
  }
  func.func @transform_1(%arg0: i32) -> i32 {
    %c0_i32 = arith.constant 0 : i32
    %c0_i32_0 = arith.constant 0 : i32
    return %c0_i32 : i32
  }
  func.func @transform_2(%arg0: i32) -> (i32, i32) {
    %c0_i32 = arith.constant 0 : i32
    %c0_i32_0 = arith.constant 0 : i32
    return %c0_i32, %arg0 : i32, i32
  }
  func.func @transform_3(%arg0: i32) -> (i32, i32) {
    %c0_i32 = arith.constant 0 : i32
    %c0_i32_0 = arith.constant 0 : i32
    return %c0_i32, %arg0 : i32, i32
  }
}

</mosaic_0001>

<llo_original>
// kernel: linear_regression.1
$region0: #{linear_regression.1}
  #allocation0 [shape = 'u32[]', space=smem, size = 0x4, offset = 0x4, fixed_abs, tag = 'smem constant byte address 0x4 - core index']
  #allocation1 [shape = 'u32[144,128]{1,0:T(1,128)}', space=vmem, size = 0x12000, scoped, tag = 'internal scratch']
  #allocation2 [shape = 'f32[1]{0:T(128)S(6)}', space=smem, size = 0x200, scoped, tag = 'scoped memory for linear_regression.1']
  %s0 = inlined_call_operand.vmem [shape: f32[2], index: 0, kind: input, shape index: {}]
  %s1 = inlined_call_operand.<no memory space> [shape: f32[1], index: 1, kind: input, shape index: {}]
  %s2 = inlined_call_operand.vmem [shape: f32[16,1], index: 2, kind: input, shape index: {}]
  %s3 = inlined_call_operand.vmem [shape: f32[8,1], index: 3, kind: output, shape index: {}]
  %s4 = sld [smem:[#allocation0]]
  $region26: #{linear_regression.1} parent=0
    _
  %s6 = ssub.s32 1, %s4
  %s7 = scalar_select 0, %s6, %s4
  %8 = sst [smem:[#allocation2]] %s1
  $region1: #{linear_regression.1} parent=0
    #allocation3 [shape = 'u8[512]{0}', space=smem, size = 0x200, scoped, tag = 'input window, operand 0, single buffered']
    #allocation4 [shape = 's32[1]{0}', space=sflag, size = 0x4, scoped, tag = 'scoped memory for linear_regression.1']
    %9 = vsyncpa [#allocation4], 0
    // Predicated region
    $region2: #{linear_regression.1} parent=1 // pred_check
      _
    $region3: #{linear_regression.1} parent=1 // pred_check_branch
      %11 = sbr.rel (0) target = $region5
    $region4: #{linear_regression.1} parent=1 // pred_region
      %s13 = ssub.s32 16, 16
      %14 = vsyncadd [#allocation4], %s13
      %s16 = sshll.u32 %s0, 4
      %s17 = int_to_ptr.vmem [resolvable:$true] %s16
      %19 = dma.vmem_to_smem %s17, 16, [#allocation3], [#allocation4]
    $region5: #{linear_regression.1} parent=1 // pred_fallthru
      _
    // Predicated region
    $region6: #{linear_regression.1} parent=1 // pred_check
      _
    $region7: #{linear_regression.1} parent=1 // pred_check_branch
      %21 = sbr.rel (0) target = $region9
    $region8: #{linear_regression.1} parent=1 // pred_region
      _
    $region9: #{linear_regression.1} parent=1 // pred_fallthru
      _
    // Predicated region
    $region10: #{linear_regression.1} parent=1 // pred_check
      _
    $region11: #{linear_regression.1} parent=1 // pred_check_branch
      %23 = sbr.rel (0) target = $region13
    $region12: #{linear_regression.1} parent=1 // pred_region
      _
    $region13: #{linear_regression.1} parent=1 // pred_fallthru
      _
    // Predicated region
    $region14: #{linear_regression.1} parent=1 // pred_check
      _
    $region15: #{linear_regression.1} parent=1 // pred_check_branch
      %25 = sbr.rel (0) target = $region17
    $region16: #{linear_regression.1} parent=1 // pred_region
      %26 = dma.done [#allocation4], 16
    $region17: #{linear_regression.1} parent=1 // pred_fallthru
      _
    %27 = sfence
    %s28 = sld [smem:[#allocation3]]
    %s29 = sld [smem:[#allocation3 + $0x1]]
    %s30 = sld [smem:[#allocation2]]
    %v31 = vld [vmem:[%s2] sm:$0xff]
    %v32 = vstv %s28
    %v33 = vmul.f32 %v31, %v32
    %v34 = vld [vmem:[%s2 + $0x8] sm:$0xff]
    %v35 = vstv %s29
    %v36 = vmul.f32 %v34, %v35
    %v37 = vadd.f32 %v33, %v36
    %v38 = vstv %s30
    %v39 = vadd.f32 %v37, %v38
    %vm40 = vcmask 7168
    %41 = vst.msk [vmem:[%s3] sm:$0xff] %vm40, %v39
    // Predicated region
    $region18: #{linear_regression.1} parent=1 // pred_check
      _
    $region19: #{linear_regression.1} parent=1 // pred_check_branch
      %43 = sbr.rel (0) target = $region21
    $region20: #{linear_regression.1} parent=1 // pred_region
      _
    $region21: #{linear_regression.1} parent=1 // pred_fallthru
      _
    // Predicated region
    $region22: #{linear_regression.1} parent=1 // pred_check
      _
    $region23: #{linear_regression.1} parent=1 // pred_check_branch
      %45 = sbr.rel (0) target = $region25
    $region24: #{linear_regression.1} parent=1 // pred_region
      _
    $region25: #{linear_regression.1} parent=1 // pred_fallthru
      _
    %46 = vsyncpa [#allocation4], 1

</llo_original>
